<compile_context>
chip_gen: v7x
topology: tpu7x:2x2x1
jax: 0.10.0
libtpu: 0.0.40
codegen_flags: <defaults>
</compile_context>

<pallas_src>
import jax
import jax.numpy as jnp
from jax.experimental import pallas as pl
from jax.experimental.pallas import tpu as pltpu


def linear_kernel(x_ref, w_ref, b_ref, o_ref):
    # x_ref: [TB, F] f32 (VMEM)  -- one tile of batch rows
    # w_ref: [F, 1]  f32 (VMEM)  -- weight column, reused every grid step
    # b_ref: [1]     f32 (SMEM)  -- scalar bias (scalar path, no VMEM tile)
    # o_ref: [1, TB] f32 (VMEM)  -- lane-dense output row (unmasked stores)
    xt = x_ref[...].T                                  # [F, TB]  XLU transpose (free-ish slot)
    prod = xt * w_ref[...]                             # [F, TB]  VPU: weight col broadcast over lanes
    rowsum = jnp.sum(prod, axis=0, keepdims=True)      # [1, TB]  sublane reduce -> lane-dense result
    o_ref[...] = rowsum + b_ref[0]                     # scalar bias read from SMEM


def linear_forward(x, weight, bias, *, block_rows=512):
    """Forward pass of LinearNet.

    x:      [B, F] float32
    weight: [1, F] float32  (same layout as torch nn.Linear.weight)
    bias:   [1]    float32  (same layout as torch nn.Linear.bias)
    returns [B, 1] float32
    """
    B, F = x.shape
    w_col = weight.astype(jnp.float32).reshape(F, 1)
    b_s = jnp.asarray(bias, jnp.float32).reshape(1)

    # --- batch tiling -------------------------------------------------------
    # Keep 2 (double buffer) * TB * F * 4 bytes at a few MiB so the tiling is
    # portable across v5e (16 MiB scoped default) / v6e / v7x (64 MiB VMEM).
    block_rows = max(128, (block_rows // 128) * 128)
    bytes_per_row = F * 4
    max_rows = max(128, ((4 * 1024 * 1024) // (2 * bytes_per_row)) // 128 * 128)

    if B <= block_rows and B <= max_rows:
        tb = B                         # single full-array block (always a legal block shape)
        b_pad = B
    else:
        tb = min(block_rows, max_rows)           # multiple of 128
        b_pad = pl.cdiv(B, tb) * tb
    x_p = x if b_pad == B else jnp.pad(x, ((0, b_pad - B), (0, 0)))

    grid = (b_pad // tb,)

    out = pl.pallas_call(
        linear_kernel,
        out_shape=jax.ShapeDtypeStruct((1, b_pad), jnp.float32),
        grid_spec=pltpu.PrefetchScalarGridSpec(
            num_scalar_prefetch=0,
            grid=grid,
            in_specs=[
                pl.BlockSpec((tb, F), lambda i: (i, 0)),               # x batch tile
                pl.BlockSpec((F, 1), lambda i: (0, 0)),                # weight column, reused
                pl.BlockSpec(memory_space=pltpu.MemorySpace.SMEM),     # bias scalar in SMEM
            ],
            out_specs=pl.BlockSpec((1, tb), lambda i: (0, i)),         # lane-dense output row
        ),
        compiler_params=pltpu.CompilerParams(
            dimension_semantics=("parallel",),   # batch tiles independent (both TCs on v7x)
            vmem_limit_bytes=32 * 1024 * 1024,
        ),
        cost_estimate=pl.CostEstimate(
            flops=2 * b_pad * F,
            transcendentals=0,
            bytes_accessed=4 * (b_pad * F + F + b_pad),
        ),
    )(x_p, w_col, b_s)

    # [1, B_pad] (lane-dense slab) -> [B, 1] (nn.Linear output layout)
    return out.reshape(b_pad, 1)[:B]


def init_linear_params(key, n_feature):
    """Deterministic init mirroring nn.Linear default: U(-1/sqrt(F), 1/sqrt(F))."""
    kw, kb = jax.random.split(key)
    bound = 1.0 / (n_feature ** 0.5)
    weight = jax.random.uniform(kw, (1, n_feature), jnp.float32, -bound, bound)
    bias = jax.random.uniform(kb, (1,), jnp.float32, -bound, bound)
    return weight, bias


def _reference(x, weight, bias):
    # Pure-VPU f32 reference (avoids TPU default matmul precision surprises).
    return jnp.sum(x * weight, axis=1, keepdims=True) + bias


if __name__ == "__main__":
    key = jax.random.PRNGKey(0)
    k_x, k_p, k_x2 = jax.random.split(key, 3)

    n_feature = 32
    weight, bias = init_linear_params(k_p, n_feature)

    # Small case (matches the original toy sizes): single full-array block.
    x_small = jax.random.normal(k_x, (8, n_feature), jnp.float32)
    y_small = linear_forward(x_small, weight, bias)
    jax.block_until_ready(y_small)
    assert y_small.shape == (8, 1)
    assert jnp.allclose(y_small, _reference(x_small, weight, bias), atol=1e-5, rtol=1e-5)

    # Larger case: exercises the batch grid + padding path (TB=128, grid=(3,)).
    x_big = jax.random.normal(k_x2, (300, n_feature), jnp.float32)
    y_big = linear_forward(x_big, weight, bias, block_rows=128)
    jax.block_until_ready(y_big)
    assert y_big.shape == (300, 1)
    assert jnp.allclose(y_big, _reference(x_big, weight, bias), atol=1e-5, rtol=1e-5)

    print("KERNEL_OK")
</pallas_src>

<mosaic_0001>
module attributes {stable_mosaic.version = 11 : i64} {
  func.func @linear_kernel(%arg0: i32, %arg1: memref<8x32xf32, #tpu.memory_space<vmem>>, %arg2: memref<32x1xf32, #tpu.memory_space<vmem>>, %arg3: memref<1xf32, #tpu.memory_space<smem>>, %arg4: memref<1x8xf32, #tpu.memory_space<vmem>>) attributes {dimension_semantics = [#tpu.dimension_semantics<parallel>], iteration_bounds = array<i64: 1>, scalar_prefetch = 0 : i64, scratch_operands = 0 : i64, tpu.core_type = #tpu.core_type<tc>, window_params = [{transform_indices = @transform_0, window_bounds = array<i64: 8, 32>}, {pipeline_mode = #tpu.pipeline_mode<synchronous>, transform_indices = @transform_1, window_bounds = array<i64: 32, 1>}, {transform_indices = @transform_2, window_bounds = array<i64: 1>}, {transform_indices = @transform_3, window_bounds = array<i64: 1, 8>}]} {
    %c0 = arith.constant 0 : index
    %c0_0 = arith.constant 0 : index
    %0 = vector.load %arg1[%c0, %c0_0] : memref<8x32xf32, #tpu.memory_space<vmem>>, vector<8x32xf32>
    %1 = tpu.transpose %0, [1, 0] : vector<8x32xf32> -> vector<32x8xf32>
    %c0_1 = arith.constant 0 : index
    %c0_2 = arith.constant 0 : index
    %2 = vector.load %arg2[%c0_1, %c0_2] : memref<32x1xf32, #tpu.memory_space<vmem>>, vector<32x1xf32>
    %3 = vector.broadcast %2 : vector<32x1xf32> to vector<32x8xf32>
    %4 = arith.mulf %1, %3 : vector<32x8xf32>
    %cst = arith.constant dense<0.000000e+00> : vector<8xf32>
    %5 = vector.multi_reduction <add>, %4, %cst [0] : vector<32x8xf32> to vector<8xf32>
    %6 = vector.shape_cast %5 : vector<8xf32> to vector<1x8xf32>
    %c0_3 = arith.constant 0 : index
    %7 = memref.load %arg3[%c0_3] : memref<1xf32, #tpu.memory_space<smem>>
    %8 = vector.broadcast %7 : f32 to vector<1x8xf32>
    %9 = arith.addf %6, %8 : vector<1x8xf32>
    %c0_4 = arith.constant 0 : index
    %c0_5 = arith.constant 0 : index
    %10 = vector.load %arg4[%c0_4, %c0_5] : memref<1x8xf32, #tpu.memory_space<vmem>>, vector<1x8xf32>
    tpu.vector_store %arg4[%c0_4, %c0_5], %9 {strides = array<i32>} : memref<1x8xf32, #tpu.memory_space<vmem>>, vector<1x8xf32>,
    return
  }
  func.func @transform_0(%arg0: i32) -> (i32, i32) {
    %c0_i32 = arith.constant 0 : i32
    %c0_i32_0 = arith.constant 0 : i32
    return %arg0, %c0_i32 : i32, i32
  }
  func.func @transform_1(%arg0: i32) -> (i32, i32) {
    %c0_i32 = arith.constant 0 : i32
    %c0_i32_0 = arith.constant 0 : i32
    %c0_i32_1 = arith.constant 0 : i32
    return %c0_i32, %c0_i32_0 : i32, i32
  }
  func.func @transform_2(%arg0: i32) -> i32 {
    %c0_i32 = arith.constant 0 : i32
    %c0_i32_0 = arith.constant 0 : i32
    return %c0_i32 : i32
  }
  func.func @transform_3(%arg0: i32) -> (i32, i32) {
    %c0_i32 = arith.constant 0 : i32
    %c0_i32_0 = arith.constant 0 : i32
    return %c0_i32, %arg0 : i32, i32
  }
}

</mosaic_0001>

<llo_original>
// kernel: tpu_custom_call.1
$region0: #{tpu_custom_call.1}
  #allocation0 [shape = 'u32[]', space=smem, size = 0x4, offset = 0x4, fixed_abs, tag = 'smem constant byte address 0x4 - core index']
  #allocation1 [shape = 'u32[144,128]{1,0:T(1,128)}', space=vmem, size = 0x12000, scoped, tag = 'internal scratch']
  #allocation2 [shape = 'f32[1]{0:T(128)S(6)}', space=smem, size = 0x200, scoped, tag = 'scoped memory for tpu_custom_call.1']
  %s0 = inlined_call_operand.vmem [shape: f32[8,32], index: 0, kind: input, shape index: {}]
  %s1 = inlined_call_operand.vmem [shape: f32[32,1], index: 1, kind: input, shape index: {}]
  %s2 = inlined_call_operand.<no memory space> [shape: f32[1], index: 2, kind: input, shape index: {}]
  %s3 = inlined_call_operand.hbm [shape: f32[1,8], index: 3, kind: output, shape index: {}]
  %s4 = sld [smem:[#allocation0]]
  $region22: #{tpu_custom_call.1} parent=0
    _
  %s6 = ssub.s32 1, %s4
  %s7 = scalar_select 0, %s6, %s4
  %8 = sst [smem:[#allocation2]] %s2
  $region1: #{tpu_custom_call.1} parent=0
    #allocation3 [shape = 'u8[512]{0}', space=vmem, size = 0x400, scoped, tag = 'output window, operand 0, single buffered']
    #allocation4 [shape = 's32[1]{0}', space=sflag, size = 0x4, scoped, tag = 'scoped memory for tpu_custom_call.1']
    %9 = vsyncpa [#allocation4], 0
    // Predicated region
    $region2: #{tpu_custom_call.1} parent=1 // pred_check
      _
    $region3: #{tpu_custom_call.1} parent=1 // pred_check_branch
      %11 = sbr.rel (0) target = $region5
    $region4: #{tpu_custom_call.1} parent=1 // pred_region
      _
    $region5: #{tpu_custom_call.1} parent=1 // pred_fallthru
      _
    // Predicated region
    $region6: #{tpu_custom_call.1} parent=1 // pred_check
      _
    $region7: #{tpu_custom_call.1} parent=1 // pred_check_branch
      %13 = sbr.rel (0) target = $region9
    $region8: #{tpu_custom_call.1} parent=1 // pred_region
      _
    $region9: #{tpu_custom_call.1} parent=1 // pred_fallthru
      _
    // Predicated region
    $region10: #{tpu_custom_call.1} parent=1 // pred_check
      _
    $region11: #{tpu_custom_call.1} parent=1 // pred_check_branch
      %15 = sbr.rel (0) target = $region13
    $region12: #{tpu_custom_call.1} parent=1 // pred_region
      _
    $region13: #{tpu_custom_call.1} parent=1 // pred_fallthru
      _
    %v16 = vld [vmem:[%s0] sm:$0xff]
    %17 = vxpose.xlu0.b32.start [1/16] %v16, 128
    %18 = vxpose.xlu0.b32.cont [2/16] 0.0, 128
    %19 = vxpose.xlu0.b32.cont [3/16] 0.0, 128
    %20 = vxpose.xlu0.b32.cont [4/16] 0.0, 128
    %21 = vxpose.xlu0.b32.cont [5/16] 0.0, 128
    %22 = vxpose.xlu0.b32.cont [6/16] 0.0, 128
    %23 = vxpose.xlu0.b32.cont [7/16] 0.0, 128
    %24 = vxpose.xlu0.b32.cont [8/16] 0.0, 128
    %25 = vxpose.xlu0.b32.cont [9/16] 0.0, 128
    %26 = vxpose.xlu0.b32.cont [10/16] 0.0, 128
    %27 = vxpose.xlu0.b32.cont [11/16] 0.0, 128
    %28 = vxpose.xlu0.b32.cont [12/16] 0.0, 128
    %29 = vxpose.xlu0.b32.cont [13/16] 0.0, 128
    %30 = vxpose.xlu0.b32.cont [14/16] 0.0, 128
    %31 = vxpose.xlu0.b32.cont [15/16] 0.0, 128
    %32 = vxpose.xlu0.b32.end [16/16] 0.0, 128
    %v33 = vpop.trf.xlu0
    %v34 = vpop.trf.xlu0
    %v35 = vpop.trf.xlu0
    %v36 = vpop.trf.xlu0
    %v37 = vpop.trf.xlu0
    %v38 = vpop.trf.xlu0
    %v39 = vpop.trf.xlu0
    %v40 = vpop.trf.xlu0
    %v41 = vpop.trf.xlu0
    %v42 = vpop.trf.xlu0
    %v43 = vpop.trf.xlu0
    %v44 = vpop.trf.xlu0
    %v45 = vpop.trf.xlu0
    %v46 = vpop.trf.xlu0
    %v47 = vpop.trf.xlu0
    %v48 = vpop.trf.xlu0
    %v49 = vld [vmem:[%s1] sm:$0xff]
    %v50 = vld [vmem:[%s1 + $0x8] sm:$0xff]
    %v51 = vld [vmem:[%s1 + $0x10] sm:$0xff]
    %v52 = vld [vmem:[%s1 + $0x18] sm:$0xff]
    %54 = vset.pattern.permute.xlu0 0
    %55 = vperm.xlu0 %54, %v49
    %v56 = vpop.permute.xlu0 %55
    %59 = vset.pattern.permute.xlu0 0
    %60 = vperm.xlu0 %59, %v50
    %v61 = vpop.permute.xlu0 %60
    %64 = vset.pattern.permute.xlu0 0
    %65 = vperm.xlu0 %64, %v51
    %v66 = vpop.permute.xlu0 %65
    %69 = vset.pattern.permute.xlu0 0
    %70 = vperm.xlu0 %69, %v52
    %v71 = vpop.permute.xlu0 %70
    %v73 = vmul.f32 %v33, %v56
    %v74 = vmul.f32 %v34, %v61
    %v75 = vmul.f32 %v35, %v66
    %v76 = vmul.f32 %v36, %v71
    %vm77 = vcmask 64512
    %v78 = vsel %vm77, %v73, 0.0
    %v79 = vsel %vm77, %v74, 0.0
    %v80 = vadd.f32 %v78, %v79
    %v81 = vsel %vm77, %v75, 0.0
    %v82 = vadd.f32 %v80, %v81
    %v83 = vsel %vm77, %v76, 0.0
    %v84 = vadd.f32 %v82, %v83
    %v85 = vrot.slane %v84, 4
    %v86 = vadd.f32 %v84, %v85
    %v87 = vrot.slane %v86, 2
    %v88 = vadd.f32 %v86, %v87
    %v89 = vrot.slane %v88, 1
    %v90 = vadd.f32 %v88, %v89
    %s91 = sld [smem:[#allocation2]]
    %v92 = vstv %s91
    %v93 = vadd.f32 %v90, %v92
    %vm94 = vcmask 57344
    %95 = vst.msk [vmem:[#allocation3] sm:$0x1] %vm94, %v93
    // Predicated region
    $region14: #{tpu_custom_call.1} parent=1 // pred_check
      _
    $region15: #{tpu_custom_call.1} parent=1 // pred_check_branch
      %97 = sbr.rel (0) target = $region17
    $region16: #{tpu_custom_call.1} parent=1 // pred_region
      %s99 = ssub.s32 16, 16
      %100 = vsyncadd [#allocation4], %s99
      %s102 = sshll.u32 [#allocation3], 4
      %s103 = int_to_ptr.vmem [resolvable:$true] %s102
      %105 = dma.vmem_to_hbm [thread:$0]  %s103, 16, %s3, [#allocation4]
    $region17: #{tpu_custom_call.1} parent=1 // pred_fallthru
      _
    // Predicated region
    $region18: #{tpu_custom_call.1} parent=1 // pred_check
      _
    $region19: #{tpu_custom_call.1} parent=1 // pred_check_branch
      %107 = sbr.rel (0) target = $region21
    $region20: #{tpu_custom_call.1} parent=1 // pred_region
      %108 = dma.done [#allocation4], 16
    $region21: #{tpu_custom_call.1} parent=1 // pred_fallthru
      _
    %109 = vsyncpa [#allocation4], 1

</llo_original>
